<compile_context>
chip_gen: v7x
topology: tpu7x:2x2x1
jax: 0.10.0
libtpu: 0.0.40
codegen_flags: <defaults>
</compile_context>

<pallas_src>
import jax
import jax.numpy as jnp
from jax.experimental import pallas as pl
from jax.experimental.pallas import tpu as pltpu


def mlp_kernel(x_ref, w1_ref, b1_ref, w2_ref, b2_ref, o_ref):
    # fc1 + ReLU (bf16 inputs, f32 accumulate)
    x = x_ref[...]
    h = jnp.dot(x, w1_ref[...], preferred_element_type=jnp.float32) + b1_ref[...]
    h = jnp.maximum(h, 0.0)
    # fc2 (cast the f32 intermediate back to the compute dtype for the MXU)
    logits = (
        jnp.dot(h.astype(x.dtype), w2_ref[...], preferred_element_type=jnp.float32)
        + b2_ref[...]
    )
    # Numerically-stable softmax over classes (PyTorch dim=1).
    # Padded classes carry a -1e30 bias -> exp underflows to 0, so padding
    # never contributes to the denominator.
    m = jnp.max(logits, axis=1, keepdims=True)
    e = jnp.exp(logits - m)
    denom = jnp.sum(e, axis=1, keepdims=True)
    o_ref[...] = (e * pl.reciprocal(denom, approx=True)).astype(o_ref.dtype)


def _round_up(n, m):
    return ((n + m - 1) // m) * m


def mlp_forward(x, w1, b1, w2, b2, *, batch_tile=512, compute_dtype=jnp.bfloat16):
    """x: (B, D_in); w1: (D_in, H); b1: (H,); w2: (H, C); b2: (C,) -> (B, C) f32."""
    B, D_in = x.shape
    H = w1.shape[1]
    C = w2.shape[1]

    # Lane-dense padding: last dims to multiples of 128 (vreg lane / MXU width),
    # batch tile a multiple of 8 sublanes, batch padded to a whole number of tiles.
    D_p = _round_up(D_in, 128)
    H_p = _round_up(H, 128)
    C_p = _round_up(C, 128)
    tile = min(batch_tile, _round_up(B, 8))
    B_p = _round_up(B, tile)

    x_p = jnp.pad(x, ((0, B_p - B), (0, D_p - D_in))).astype(compute_dtype)
    w1_p = jnp.pad(w1, ((0, D_p - D_in), (0, H_p - H))).astype(compute_dtype)
    b1_p = jnp.pad(b1, (0, H_p - H)).reshape(1, H_p).astype(jnp.float32)
    w2_p = jnp.pad(w2, ((0, H_p - H), (0, C_p - C))).astype(compute_dtype)
    # Huge negative bias on padded classes -> softmax sends them to exactly 0.
    b2_p = (
        jnp.pad(b2, (0, C_p - C), constant_values=-1e30)
        .reshape(1, C_p)
        .astype(jnp.float32)
    )

    grid = (B_p // tile,)
    out = pl.pallas_call(
        mlp_kernel,
        out_shape=jax.ShapeDtypeStruct((B_p, C_p), jnp.float32),
        grid_spec=pltpu.PrefetchScalarGridSpec(
            num_scalar_prefetch=0,
            grid=grid,
            in_specs=[
                pl.BlockSpec((tile, D_p), lambda i: (i, 0)),   # x tile
                pl.BlockSpec((D_p, H_p), lambda i: (0, 0)),    # w1 (resident)
                pl.BlockSpec((1, H_p), lambda i: (0, 0)),      # b1
                pl.BlockSpec((H_p, C_p), lambda i: (0, 0)),    # w2 (resident)
                pl.BlockSpec((1, C_p), lambda i: (0, 0)),      # b2
            ],
            out_specs=pl.BlockSpec((tile, C_p), lambda i: (i, 0)),
        ),
        compiler_params=pltpu.CompilerParams(
            dimension_semantics=("parallel",),
        ),
    )(x_p, w1_p, b1_p, w2_p, b2_p)
    return out[:B, :C]


def init_params(key, input_size, hidden_size, num_classes):
    # Deterministic init mimicking nn.Linear's uniform(-1/sqrt(fan_in), 1/sqrt(fan_in)).
    k1, k2, k3, k4 = jax.random.split(key, 4)
    bound1 = 1.0 / jnp.sqrt(input_size)
    bound2 = 1.0 / jnp.sqrt(hidden_size)
    # stored pre-transposed: (in_features, out_features)
    w1 = jax.random.uniform(k1, (input_size, hidden_size), jnp.float32, -bound1, bound1)
    b1 = jax.random.uniform(k2, (hidden_size,), jnp.float32, -bound1, bound1)
    w2 = jax.random.uniform(k3, (hidden_size, num_classes), jnp.float32, -bound2, bound2)
    b2 = jax.random.uniform(k4, (num_classes,), jnp.float32, -bound2, bound2)
    return w1, b1, w2, b2


if __name__ == "__main__":
    B, input_size, hidden_size, num_classes = 64, 32, 64, 10
    key = jax.random.PRNGKey(0)
    kx, kp = jax.random.split(key)
    x = jax.random.normal(kx, (B, input_size), dtype=jnp.float32)
    w1, b1, w2, b2 = init_params(kp, input_size, hidden_size, num_classes)

    out = mlp_forward(x, w1, b1, w2, b2)
    out = jax.block_until_ready(out)

    # Reference in plain JAX, mirroring the kernel's bf16-input / f32-accumulate matmuls.
    bf = jnp.bfloat16
    h_ref = jnp.maximum(
        jnp.dot(x.astype(bf), w1.astype(bf), preferred_element_type=jnp.float32) + b1,
        0.0,
    )
    logits_ref = (
        jnp.dot(h_ref.astype(bf), w2.astype(bf), preferred_element_type=jnp.float32) + b2
    )
    ref = jax.nn.softmax(logits_ref, axis=1)

    assert out.shape == (B, num_classes)
    assert jnp.allclose(out, ref, atol=5e-3, rtol=5e-3), float(jnp.max(jnp.abs(out - ref)))
    assert jnp.allclose(jnp.sum(out, axis=1), 1.0, atol=5e-3)

    print("KERNEL_OK")
</pallas_src>

<mosaic_0001>
module attributes {stable_mosaic.version = 11 : i64} {
  func.func @mlp_kernel(%arg0: i32, %arg1: memref<64x128xbf16, #tpu.memory_space<vmem>>, %arg2: memref<128x128xbf16, #tpu.memory_space<vmem>>, %arg3: memref<1x128xf32, #tpu.memory_space<vmem>>, %arg4: memref<128x128xbf16, #tpu.memory_space<vmem>>, %arg5: memref<1x128xf32, #tpu.memory_space<vmem>>, %arg6: memref<64x128xf32, #tpu.memory_space<vmem>>) attributes {dimension_semantics = [#tpu.dimension_semantics<parallel>], iteration_bounds = array<i64: 1>, scalar_prefetch = 0 : i64, scratch_operands = 0 : i64, tpu.core_type = #tpu.core_type<tc>, window_params = [{transform_indices = @transform_0, window_bounds = array<i64: 64, 128>}, {pipeline_mode = #tpu.pipeline_mode<synchronous>, transform_indices = @transform_1, window_bounds = array<i64: 128, 128>}, {pipeline_mode = #tpu.pipeline_mode<synchronous>, transform_indices = @transform_2, window_bounds = array<i64: 1, 128>}, {pipeline_mode = #tpu.pipeline_mode<synchronous>, transform_indices = @transform_3, window_bounds = array<i64: 128, 128>}, {pipeline_mode = #tpu.pipeline_mode<synchronous>, transform_indices = @transform_4, window_bounds = array<i64: 1, 128>}, {transform_indices = @transform_5, window_bounds = array<i64: 64, 128>}]} {
    %c0 = arith.constant 0 : index
    %c0_0 = arith.constant 0 : index
    %0 = vector.load %arg1[%c0, %c0_0] : memref<64x128xbf16, #tpu.memory_space<vmem>>, vector<64x128xbf16>
    %c0_1 = arith.constant 0 : index
    %c0_2 = arith.constant 0 : index
    %1 = vector.load %arg2[%c0_1, %c0_2] : memref<128x128xbf16, #tpu.memory_space<vmem>>, vector<128x128xbf16>
    %cst = arith.constant dense<0.000000e+00> : vector<64x128xf32>
    %2 = tpu.matmul %0, %1, %cst {dimension_numbers = #tpu.dot_dimension_numbers<[1], [0], [0], [1], [0, 0, 1, 1], [], []>} : vector<64x128xbf16>, vector<128x128xbf16>, vector<64x128xf32> -> vector<64x128xf32>
    %c0_3 = arith.constant 0 : index
    %c0_4 = arith.constant 0 : index
    %3 = vector.load %arg3[%c0_3, %c0_4] : memref<1x128xf32, #tpu.memory_space<vmem>>, vector<1x128xf32>
    %4 = vector.broadcast %3 : vector<1x128xf32> to vector<64x128xf32>
    %5 = arith.addf %2, %4 : vector<64x128xf32>
    %cst_5 = arith.constant 0.000000e+00 : f32
    %6 = vector.broadcast %cst_5 : f32 to vector<64x128xf32>
    %7 = arith.maximumf %5, %6 : vector<64x128xf32>
    %8 = arith.truncf %7 : vector<64x128xf32> to vector<64x128xbf16>
    %c0_6 = arith.constant 0 : index
    %c0_7 = arith.constant 0 : index
    %9 = vector.load %arg4[%c0_6, %c0_7] : memref<128x128xbf16, #tpu.memory_space<vmem>>, vector<128x128xbf16>
    %cst_8 = arith.constant dense<0.000000e+00> : vector<64x128xf32>
    %10 = tpu.matmul %8, %9, %cst_8 {dimension_numbers = #tpu.dot_dimension_numbers<[1], [0], [0], [1], [0, 0, 1, 1], [], []>} : vector<64x128xbf16>, vector<128x128xbf16>, vector<64x128xf32> -> vector<64x128xf32>
    %c0_9 = arith.constant 0 : index
    %c0_10 = arith.constant 0 : index
    %11 = vector.load %arg5[%c0_9, %c0_10] : memref<1x128xf32, #tpu.memory_space<vmem>>, vector<1x128xf32>
    %12 = vector.broadcast %11 : vector<1x128xf32> to vector<64x128xf32>
    %13 = arith.addf %10, %12 : vector<64x128xf32>
    %cst_11 = arith.constant dense<0xFF800000> : vector<64xf32>
    %14 = vector.multi_reduction <maximumf>, %13, %cst_11 [1] : vector<64x128xf32> to vector<64xf32>
    %15 = vector.shape_cast %14 : vector<64xf32> to vector<64x1xf32>
    %16 = vector.broadcast %15 : vector<64x1xf32> to vector<64x128xf32>
    %17 = arith.subf %13, %16 : vector<64x128xf32>
    %18 = math.exp %17 : vector<64x128xf32>
    %cst_12 = arith.constant dense<0.000000e+00> : vector<64xf32>
    %19 = vector.multi_reduction <add>, %18, %cst_12 [1] : vector<64x128xf32> to vector<64xf32>
    %20 = vector.shape_cast %19 : vector<64xf32> to vector<64x1xf32>
    %21 = tpu.reciprocal %20 {approx = true} : vector<64x1xf32> -> vector<64x1xf32>
    %22 = vector.broadcast %21 : vector<64x1xf32> to vector<64x128xf32>
    %23 = arith.mulf %18, %22 : vector<64x128xf32>
    %c0_13 = arith.constant 0 : index
    %c0_14 = arith.constant 0 : index
    %24 = vector.load %arg6[%c0_13, %c0_14] : memref<64x128xf32, #tpu.memory_space<vmem>>, vector<64x128xf32>
    tpu.vector_store %arg6[%c0_13, %c0_14], %23 {strides = array<i32>} : memref<64x128xf32, #tpu.memory_space<vmem>>, vector<64x128xf32>,
    return
  }
  func.func @transform_0(%arg0: i32) -> (i32, i32) {
    %c0_i32 = arith.constant 0 : i32
    %c0_i32_0 = arith.constant 0 : i32
    return %arg0, %c0_i32 : i32, i32
  }
  func.func @transform_1(%arg0: i32) -> (i32, i32) {
    %c0_i32 = arith.constant 0 : i32
    %c0_i32_0 = arith.constant 0 : i32
    %c0_i32_1 = arith.constant 0 : i32
    return %c0_i32, %c0_i32_0 : i32, i32
  }
  func.func @transform_2(%arg0: i32) -> (i32, i32) {
    %c0_i32 = arith.constant 0 : i32
    %c0_i32_0 = arith.constant 0 : i32
    %c0_i32_1 = arith.constant 0 : i32
    return %c0_i32, %c0_i32_0 : i32, i32
  }
  func.func @transform_3(%arg0: i32) -> (i32, i32) {
    %c0_i32 = arith.constant 0 : i32
    %c0_i32_0 = arith.constant 0 : i32
    %c0_i32_1 = arith.constant 0 : i32
    return %c0_i32, %c0_i32_0 : i32, i32
  }
  func.func @transform_4(%arg0: i32) -> (i32, i32) {
    %c0_i32 = arith.constant 0 : i32
    %c0_i32_0 = arith.constant 0 : i32
    %c0_i32_1 = arith.constant 0 : i32
    return %c0_i32, %c0_i32_0 : i32, i32
  }
  func.func @transform_5(%arg0: i32) -> (i32, i32) {
    %c0_i32 = arith.constant 0 : i32
    %c0_i32_0 = arith.constant 0 : i32
    return %arg0, %c0_i32 : i32, i32
  }
}

</mosaic_0001>

<llo_original>
// kernel: tpu_custom_call.1
$region0: #{tpu_custom_call.1}
  #allocation0 [shape = 'u32[]', space=smem, size = 0x4, offset = 0x4, fixed_abs, tag = 'smem constant byte address 0x4 - core index']
  #allocation1 [shape = 'u32[144,128]{1,0:T(1,128)}', space=vmem, size = 0x12000, scoped, tag = 'internal scratch']
  %s0 = inlined_call_operand.hbm [shape: bf16[64,128], index: 0, kind: input, shape index: {}]
  %s1 = inlined_call_operand.hbm [shape: bf16[128,128], index: 1, kind: input, shape index: {}]
  %s2 = inlined_call_operand.vmem [shape: f32[1,128], index: 2, kind: input, shape index: {}]
  %s3 = inlined_call_operand.hbm [shape: bf16[128,128], index: 3, kind: input, shape index: {}]
  %s4 = inlined_call_operand.vmem [shape: f32[1,128], index: 4, kind: input, shape index: {}]
  %s5 = inlined_call_operand.hbm [shape: f32[64,128], index: 5, kind: output, shape index: {}]
  %s6 = sld [smem:[#allocation0]]
  $region42: #{tpu_custom_call.1} parent=0
    _
  %s8 = ssub.s32 1, %s6
  %s9 = scalar_select 0, %s8, %s6
  $region1: #{tpu_custom_call.1} parent=0
    #allocation2 [shape = 'u8[16384]{0}', space=vmem, size = 0x4000, scoped, tag = 'input window, operand 0, single buffered']
    #allocation3 [shape = 's32[1]{0}', space=sflag, size = 0x4, scoped, tag = 'scoped memory for tpu_custom_call.1']
    #allocation4 [shape = 's32[1]{0}', space=sflag, size = 0x4, scoped, tag = 'scoped memory for tpu_custom_call.1']
    #allocation5 [shape = 'u8[32768]{0}', space=vmem, size = 0x8000, scoped, tag = 'input window, operand 1, single buffered']
    #allocation6 [shape = 's32[1]{0}', space=sflag, size = 0x4, scoped, tag = 'scoped memory for tpu_custom_call.1']
    #allocation7 [shape = 'u8[32768]{0}', space=vmem, size = 0x8000, scoped, tag = 'input window, operand 3, single buffered']
    #allocation8 [shape = 'u8[32768]{0}', space=vmem, size = 0x8000, scoped, tag = 'output window, operand 0, single buffered']
    %10 = vsyncpa [#allocation3], 0
    %11 = vsyncpa [#allocation6], 0
    %12 = vsyncpa [#allocation4], 0
    // Predicated region
    $region2: #{tpu_custom_call.1} parent=1 // pred_check
      _
    $region3: #{tpu_custom_call.1} parent=1 // pred_check_branch
      %14 = sbr.rel (0) target = $region5
    $region4: #{tpu_custom_call.1} parent=1 // pred_region
      %s16 = ssub.s32 512, 512
      %17 = vsyncadd [#allocation3], %s16
      %s18 = sshll.u32 [#allocation2], 4
      %s19 = int_to_ptr.vmem [resolvable:$true] %s18
      %24 = dma.hbm_to_vmem [thread:$0]  %s0, 512, %s19, [#allocation3], 64, 64, 4
    $region5: #{tpu_custom_call.1} parent=1 // pred_fallthru
      _
    // Predicated region
    $region6: #{tpu_custom_call.1} parent=1 // pred_check
      _
    $region7: #{tpu_custom_call.1} parent=1 // pred_check_branch
      %26 = sbr.rel (0) target = $region9
    $region8: #{tpu_custom_call.1} parent=1 // pred_region
      %s28 = ssub.s32 1024, 1024
      %29 = vsyncadd [#allocation6], %s28
      %s30 = sshll.u32 [#allocation5], 4
      %s31 = int_to_ptr.vmem [resolvable:$true] %s30
      %36 = dma.hbm_to_vmem [thread:$0]  %s1, 1024, %s31, [#allocation6], 64, 64, 4
    $region9: #{tpu_custom_call.1} parent=1 // pred_fallthru
      _
    // Predicated region
    $region10: #{tpu_custom_call.1} parent=1 // pred_check
      _
    $region11: #{tpu_custom_call.1} parent=1 // pred_check_branch
      %38 = sbr.rel (0) target = $region13
    $region12: #{tpu_custom_call.1} parent=1 // pred_region
      _
    $region13: #{tpu_custom_call.1} parent=1 // pred_fallthru
      _
    // Predicated region
    $region14: #{tpu_custom_call.1} parent=1 // pred_check
      _
    $region15: #{tpu_custom_call.1} parent=1 // pred_check_branch
      %40 = sbr.rel (0) target = $region17
    $region16: #{tpu_custom_call.1} parent=1 // pred_region
      %s42 = ssub.s32 1024, 1024
      %43 = vsyncadd [#allocation6], %s42
      %s44 = sshll.u32 [#allocation7], 4
      %s45 = int_to_ptr.vmem [resolvable:$true] %s44
      %50 = dma.hbm_to_vmem [thread:$0]  %s3, 1024, %s45, [#allocation6], 64, 64, 4
    $region17: #{tpu_custom_call.1} parent=1 // pred_fallthru
      _
    // Predicated region
    $region18: #{tpu_custom_call.1} parent=1 // pred_check
      _
    $region19: #{tpu_custom_call.1} parent=1 // pred_check_branch
      %52 = sbr.rel (0) target = $region21
    $region20: #{tpu_custom_call.1} parent=1 // pred_region
      _
    $region21: #{tpu_custom_call.1} parent=1 // pred_fallthru
      _
    // Predicated region
    $region22: #{tpu_custom_call.1} parent=1 // pred_check
      _
    $region23: #{tpu_custom_call.1} parent=1 // pred_check_branch
      %54 = sbr.rel (0) target = $region25
    $region24: #{tpu_custom_call.1} parent=1 // pred_region
      %55 = dma.done [#allocation3], 512
    $region25: #{tpu_custom_call.1} parent=1 // pred_fallthru
      _
    // Predicated region
    $region26: #{tpu_custom_call.1} parent=1 // pred_check
      _
    $region27: #{tpu_custom_call.1} parent=1 // pred_check_branch
      %57 = sbr.rel (0) target = $region29
    $region28: #{tpu_custom_call.1} parent=1 // pred_region
      %58 = dma.done [#allocation6], 1024
    $region29: #{tpu_custom_call.1} parent=1 // pred_fallthru
      _
    // Predicated region
    $region30: #{tpu_custom_call.1} parent=1 // pred_check
      _
    $region31: #{tpu_custom_call.1} parent=1 // pred_check_branch
      %60 = sbr.rel (0) target = $region33
    $region32: #{tpu_custom_call.1} parent=1 // pred_region
      %61 = dma.done [#allocation6], 1024
    $region33: #{tpu_custom_call.1} parent=1 // pred_fallthru
      _
    %v63 = vld [vmem:[#allocation2] sm:$0xf]
    %v64 = vld [vmem:[#allocation2 + $0x4] sm:$0xf]
    %v65 = vld [vmem:[#allocation2 + $0x8] sm:$0xf]
    %v66 = vld [vmem:[#allocation2 + $0xc] sm:$0xf]
    %v67 = vld [vmem:[#allocation2 + $0x10] sm:$0xf]
    %v68 = vld [vmem:[#allocation2 + $0x14] sm:$0xf]
    %v69 = vld [vmem:[#allocation2 + $0x18] sm:$0xf]
    %v70 = vld [vmem:[#allocation2 + $0x1c] sm:$0xf]
    %v71 = vld [vmem:[#allocation5] sm:$0xf]
    %v72 = vld [vmem:[#allocation5 + $0x4] sm:$0xf]
    %v73 = vld [vmem:[#allocation5 + $0x8] sm:$0xf]
    %v74 = vld [vmem:[#allocation5 + $0xc] sm:$0xf]
    %v75 = vld [vmem:[#allocation5 + $0x10] sm:$0xf]
    %v76 = vld [vmem:[#allocation5 + $0x14] sm:$0xf]
    %v77 = vld [vmem:[#allocation5 + $0x18] sm:$0xf]
    %v78 = vld [vmem:[#allocation5 + $0x1c] sm:$0xf]
    %v79 = vld [vmem:[#allocation5 + $0x20] sm:$0xf]
    %v80 = vld [vmem:[#allocation5 + $0x24] sm:$0xf]
    %v81 = vld [vmem:[#allocation5 + $0x28] sm:$0xf]
    %v82 = vld [vmem:[#allocation5 + $0x2c] sm:$0xf]
    %v83 = vld [vmem:[#allocation5 + $0x30] sm:$0xf]
    %v84 = vld [vmem:[#allocation5 + $0x34] sm:$0xf]
    %v85 = vld [vmem:[#allocation5 + $0x38] sm:$0xf]
    %v86 = vld [vmem:[#allocation5 + $0x3c] sm:$0xf]
    %v87 = vld [vmem:[%s2] sm:$0x1]
    %v89 = vlaneseq
    %v90 = vshrl.u32 %v89, 7
    %v91 = vsub.s32 0, %v90
    %v92 = vrot.slane %v87, %v91
    %v102 = vunpack.c.l.b16 %v63
    %v103 = vunpack.c.l.b16 %v64
    %v104 = vunpack.c.l.b16 %v65
    %v105 = vunpack.c.l.b16 %v66
    %v106 = vunpack.c.l.b16 %v67
    %v107 = vunpack.c.l.b16 %v68
    %v108 = vunpack.c.l.b16 %v69
    %v109 = vunpack.c.l.b16 %v70
    %v110 = vpack.c.b16 %v103, %v102
    %v111 = vpack.c.b16 %v105, %v104
    %v112 = vpack.c.b16 %v107, %v106
    %v113 = vpack.c.b16 %v109, %v108
    %v134 = vunpack.c.l.b16 %v71
    %v135 = vunpack.c.l.b16 %v72
    %v136 = vunpack.c.l.b16 %v73
    %v137 = vunpack.c.l.b16 %v74
    %v138 = vunpack.c.l.b16 %v75
    %v139 = vunpack.c.l.b16 %v76
    %v140 = vunpack.c.l.b16 %v77
    %v141 = vunpack.c.l.b16 %v78
    %v142 = vunpack.c.l.b16 %v79
    %v143 = vunpack.c.l.b16 %v80
    %v144 = vunpack.c.l.b16 %v81
    %v145 = vunpack.c.l.b16 %v82
    %v146 = vunpack.c.l.b16 %v83
    %v147 = vunpack.c.l.b16 %v84
    %v148 = vunpack.c.l.b16 %v85
    %v149 = vunpack.c.l.b16 %v86
    %v150 = vpack.c.b16 %v135, %v134
    %v151 = vpack.c.b16 %v137, %v136
    %v152 = vpack.c.b16 %v139, %v138
    %v153 = vpack.c.b16 %v141, %v140
    %v154 = vpack.c.b16 %v143, %v142
    %v155 = vpack.c.b16 %v145, %v144
    %v156 = vpack.c.b16 %v147, %v146
    %v157 = vpack.c.b16 %v149, %v148
    %166 = vmatprep.subr.bf16.mxu0 0
    %167 = vmatpush1.bf16.msra.mxu0 %v150
    %168 = vmatprep.subr.bf16.mxu0 0
    %169 = vmatpush1.bf16.msra.mxu0 %v151
    %170 = vmatprep.subr.bf16.mxu0 0
    %171 = vmatpush1.bf16.msra.mxu0 %v152
    %172 = vmatprep.subr.bf16.mxu0 0
    %173 = vmatpush1.bf16.msra.mxu0 %v153
    %174 = vmatprep.subr.bf16.mxu0 0
    %175 = vmatpush1.bf16.msra.mxu0 %v154
    %176 = vmatprep.subr.bf16.mxu0 0
    %177 = vmatpush1.bf16.msra.mxu0 %v155
    %178 = vmatprep.subr.bf16.mxu0 0
    %179 = vmatpush1.bf16.msra.mxu0 %v156
    %180 = vmatprep.subr.bf16.mxu0 0
    %181 = vmatpush1.bf16.msra.mxu0 %v157
    %182 = vmatprep.subr.bf16.mxu0 0
    %183 = vmatpush1.bf16.msra.mxu0 0
    %184 = vmatprep.subr.bf16.mxu0 0
    %185 = vmatpush1.bf16.msra.mxu0 0
    %186 = vmatprep.subr.bf16.mxu0 0
    %187 = vmatpush1.bf16.msra.mxu0 0
    %188 = vmatprep.subr.bf16.mxu0 0
    %189 = vmatpush1.bf16.msra.mxu0 0
    %190 = vmatprep.subr.bf16.mxu0 0
    %191 = vmatpush1.bf16.msra.mxu0 0
    %192 = vmatprep.subr.bf16.mxu0 0
    %193 = vmatpush1.bf16.msra.mxu0 0
    %194 = vmatprep.subr.bf16.mxu0 0
    %195 = vmatpush1.bf16.msra.mxu0 0
    %196 = vmatprep.subr.bf16.mxu0 0
    %197 = vmatpush1.bf16.msra.mxu0 0
    %198 = vmatprep.mubr.bf16.mxu0 0
    %199 = vmatmul.mubr.bf16.gmra.mrb[0].mxu0 %v110
    %v200 = vpop.f32.mrb[0].mxu0
    %v201 = vadd.f32 %v92, %v200
    %v202 = vpop.f32.mrb[0].mxu0
    %v203 = vpop.f32.mrb[0].mxu0
    %v204 = vadd.f32 %v92, %v203
    %v205 = vpop.f32.mrb[0].mxu0
    %206 = vmatprep.mubr.bf16.mxu0 0
    %207 = vmatmul.mubr.bf16.gmra.mrb[0].mxu0 %v111
    %v208 = vpop.f32.mrb[0].mxu0
    %v209 = vadd.f32 %v92, %v208
    %v210 = vpop.f32.mrb[0].mxu0
    %v211 = vpop.f32.mrb[0].mxu0
    %v212 = vadd.f32 %v92, %v211
    %v213 = vpop.f32.mrb[0].mxu0
    %214 = vmatprep.mubr.bf16.mxu0 0
    %215 = vmatmul.mubr.bf16.gmra.mrb[0].mxu0 %v112
    %v216 = vpop.f32.mrb[0].mxu0
    %v217 = vadd.f32 %v92, %v216
    %v218 = vpop.f32.mrb[0].mxu0
    %v219 = vpop.f32.mrb[0].mxu0
    %v220 = vadd.f32 %v92, %v219
    %v221 = vpop.f32.mrb[0].mxu0
    %222 = vmatprep.mubr.bf16.mxu0 0
    %223 = vmatmul.mubr.bf16.gmra.mrb[0].mxu0 %v113
    %v224 = vpop.f32.mrb[0].mxu0
    %v225 = vadd.f32 %v92, %v224
    %v226 = vpop.f32.mrb[0].mxu0
    %v227 = vpop.f32.mrb[0].mxu0
    %v228 = vadd.f32 %v92, %v227
    %v229 = vpop.f32.mrb[0].mxu0
    %230 = vdwg.mxu0
    %v231 = vmax.f32 %v201, 0.0
    %v232 = vmax.f32 %v204, 0.0
    %v233 = vmax.f32 %v209, 0.0
    %v234 = vmax.f32 %v212, 0.0
    %v235 = vmax.f32 %v217, 0.0
    %v236 = vmax.f32 %v220, 0.0
    %v237 = vmax.f32 %v225, 0.0
    %v238 = vmax.f32 %v228, 0.0
    %v239 = vpack.c.bf16 %v232, %v231
    %v240 = vpack.c.bf16 %v234, %v233
    %v241 = vpack.c.bf16 %v236, %v235
    %v242 = vpack.c.bf16 %v238, %v237
    %v243 = vld [vmem:[#allocation7] sm:$0xf]
    %v244 = vld [vmem:[#allocation7 + $0x4] sm:$0xf]
    %v245 = vld [vmem:[#allocation7 + $0x8] sm:$0xf]
    %v246 = vld [vmem:[#allocation7 + $0xc] sm:$0xf]
    %v247 = vld [vmem:[#allocation7 + $0x10] sm:$0xf]
    %v248 = vld [vmem:[#allocation7 + $0x14] sm:$0xf]
    %v249 = vld [vmem:[#allocation7 + $0x18] sm:$0xf]
    %v250 = vld [vmem:[#allocation7 + $0x1c] sm:$0xf]
    %v251 = vld [vmem:[#allocation7 + $0x20] sm:$0xf]
    %v252 = vld [vmem:[#allocation7 + $0x24] sm:$0xf]
    %v253 = vld [vmem:[#allocation7 + $0x28] sm:$0xf]
    %v254 = vld [vmem:[#allocation7 + $0x2c] sm:$0xf]
    %v255 = vld [vmem:[#allocation7 + $0x30] sm:$0xf]
    %v256 = vld [vmem:[#allocation7 + $0x34] sm:$0xf]
    %v257 = vld [vmem:[#allocation7 + $0x38] sm:$0xf]
    %v258 = vld [vmem:[#allocation7 + $0x3c] sm:$0xf]
    %v259 = vld [vmem:[%s4] sm:$0x1]
    %v261 = vlaneseq
    %v262 = vshrl.u32 %v261, 7
    %v263 = vsub.s32 0, %v262
    %v264 = vrot.slane %v259, %v263
    %v282 = vunpack.c.l.b16 %v243
    %v283 = vunpack.c.l.b16 %v244
    %v284 = vunpack.c.l.b16 %v245
    %v285 = vunpack.c.l.b16 %v246
    %v286 = vunpack.c.l.b16 %v247
    %v287 = vunpack.c.l.b16 %v248
    %v288 = vunpack.c.l.b16 %v249
    %v289 = vunpack.c.l.b16 %v250
    %v290 = vunpack.c.l.b16 %v251
    %v291 = vunpack.c.l.b16 %v252
    %v292 = vunpack.c.l.b16 %v253
    %v293 = vunpack.c.l.b16 %v254
    %v294 = vunpack.c.l.b16 %v255
    %v295 = vunpack.c.l.b16 %v256
    %v296 = vunpack.c.l.b16 %v257
    %v297 = vunpack.c.l.b16 %v258
    %v298 = vpack.c.b16 %v283, %v282
    %v299 = vpack.c.b16 %v285, %v284
    %v300 = vpack.c.b16 %v287, %v286
    %v301 = vpack.c.b16 %v289, %v288
    %v302 = vpack.c.b16 %v291, %v290
    %v303 = vpack.c.b16 %v293, %v292
    %v304 = vpack.c.b16 %v295, %v294
    %v305 = vpack.c.b16 %v297, %v296
    %314 = vmatprep.subr.bf16.mxu0 0
    %315 = vmatpush1.bf16.msra.mxu0 %v298
    %316 = vmatprep.subr.bf16.mxu0 0
    %317 = vmatpush1.bf16.msra.mxu0 %v299
    %318 = vmatprep.subr.bf16.mxu0 0
    %319 = vmatpush1.bf16.msra.mxu0 %v300
    %320 = vmatprep.subr.bf16.mxu0 0
    %321 = vmatpush1.bf16.msra.mxu0 %v301
    %322 = vmatprep.subr.bf16.mxu0 0
    %323 = vmatpush1.bf16.msra.mxu0 %v302
    %324 = vmatprep.subr.bf16.mxu0 0
    %325 = vmatpush1.bf16.msra.mxu0 %v303
    %326 = vmatprep.subr.bf16.mxu0 0
    %327 = vmatpush1.bf16.msra.mxu0 %v304
    %328 = vmatprep.subr.bf16.mxu0 0
    %329 = vmatpush1.bf16.msra.mxu0 %v305
    %330 = vmatprep.subr.bf16.mxu0 0
    %331 = vmatpush1.bf16.msra.mxu0 0
    %332 = vmatprep.subr.bf16.mxu0 0
    %333 = vmatpush1.bf16.msra.mxu0 0
    %334 = vmatprep.subr.bf16.mxu0 0
    %335 = vmatpush1.bf16.msra.mxu0 0
    %336 = vmatprep.subr.bf16.mxu0 0
    %337 = vmatpush1.bf16.msra.mxu0 0
    %338 = vmatprep.subr.bf16.mxu0 0
    %339 = vmatpush1.bf16.msra.mxu0 0
    %340 = vmatprep.subr.bf16.mxu0 0
    %341 = vmatpush1.bf16.msra.mxu0 0
    %342 = vmatprep.subr.bf16.mxu0 0
    %343 = vmatpush1.bf16.msra.mxu0 0
    %344 = vmatprep.subr.bf16.mxu0 0
    %345 = vmatpush1.bf16.msra.mxu0 0
    %346 = vmatprep.mubr.bf16.mxu0 0
    %347 = vmatmul.mubr.bf16.gmra.mrb[0].mxu0 %v239
    %v348 = vpop.f32.mrb[0].mxu0
    %v349 = vadd.f32 %v264, %v348
    %v350 = vpop.f32.mrb[0].mxu0
    %v351 = vpop.f32.mrb[0].mxu0
    %v352 = vadd.f32 %v264, %v351
    %v353 = vpop.f32.mrb[0].mxu0
    %354 = vmatprep.mubr.bf16.mxu0 0
    %355 = vmatmul.mubr.bf16.gmra.mrb[0].mxu0 %v240
    %v356 = vpop.f32.mrb[0].mxu0
    %v357 = vadd.f32 %v264, %v356
    %v358 = vpop.f32.mrb[0].mxu0
    %v359 = vpop.f32.mrb[0].mxu0
    %v360 = vadd.f32 %v264, %v359
    %v361 = vpop.f32.mrb[0].mxu0
    %362 = vmatprep.mubr.bf16.mxu0 0
    %363 = vmatmul.mubr.bf16.gmra.mrb[0].mxu0 %v241
    %v364 = vpop.f32.mrb[0].mxu0
    %v365 = vadd.f32 %v264, %v364
    %v366 = vpop.f32.mrb[0].mxu0
    %v367 = vpop.f32.mrb[0].mxu0
    %v368 = vadd.f32 %v264, %v367
    %v369 = vpop.f32.mrb[0].mxu0
    %370 = vmatprep.mubr.bf16.mxu0 0
    %371 = vmatmul.mubr.bf16.gmra.mrb[0].mxu0 %v242
    %v372 = vpop.f32.mrb[0].mxu0
    %v373 = vadd.f32 %v264, %v372
    %v374 = vpop.f32.mrb[0].mxu0
    %v375 = vpop.f32.mrb[0].mxu0
    %v376 = vadd.f32 %v264, %v375
    %v377 = vpop.f32.mrb[0].mxu0
    %378 = vdwg.mxu0
    %379 = vmax.xlane.f32.xlu0 %v349
    %v380 = vpop.xlane.xlu0 %379
    %381 = vmax.xlane.f32.xlu0 %v352
    %v382 = vpop.xlane.xlu0 %381
    %383 = vmax.xlane.f32.xlu0 %v357
    %v384 = vpop.xlane.xlu0 %383
    %385 = vmax.xlane.f32.xlu0 %v360
    %v386 = vpop.xlane.xlu0 %385
    %387 = vmax.xlane.f32.xlu0 %v365
    %v388 = vpop.xlane.xlu0 %387
    %389 = vmax.xlane.f32.xlu0 %v368
    %v390 = vpop.xlane.xlu0 %389
    %391 = vmax.xlane.f32.xlu0 %v373
    %v392 = vpop.xlane.xlu0 %391
    %393 = vmax.xlane.f32.xlu0 %v376
    %v394 = vpop.xlane.xlu0 %393
    %v395 = vsub.f32 %v349, %v380
    %v396 = vsub.f32 %v352, %v382
    %v397 = vsub.f32 %v357, %v384
    %v398 = vsub.f32 %v360, %v386
    %v399 = vsub.f32 %v365, %v388
    %v400 = vsub.f32 %v368, %v390
    %v401 = vsub.f32 %v373, %v392
    %v402 = vsub.f32 %v376, %v394
    %v403 = vmul.f32 %v395, 1.442695
    %v404 = vpow.pop %v403
    %v405 = vmul.f32 %v396, 1.442695
    %v406 = vpow.pop %v405
    %v407 = vmul.f32 %v397, 1.442695
    %v408 = vpow.pop %v407
    %v409 = vmul.f32 %v398, 1.442695
    %v410 = vpow.pop %v409
    %v411 = vmul.f32 %v399, 1.442695
    %v412 = vpow.pop %v411
    %v413 = vmul.f32 %v400, 1.442695
    %v414 = vpow.pop %v413
    %v415 = vmul.f32 %v401, 1.442695
    %v416 = vpow.pop %v415
    %v417 = vmul.f32 %v402, 1.442695
    %v418 = vpow.pop %v417
    %419 = vadd.xlane.f32.xlu0 %v404
    %v420 = vpop.xlane.xlu0 %419
    %421 = vadd.xlane.f32.xlu0 %v406
    %v422 = vpop.xlane.xlu0 %421
    %423 = vadd.xlane.f32.xlu0 %v408
    %v424 = vpop.xlane.xlu0 %423
    %425 = vadd.xlane.f32.xlu0 %v410
    %v426 = vpop.xlane.xlu0 %425
    %427 = vadd.xlane.f32.xlu0 %v412
    %v428 = vpop.xlane.xlu0 %427
    %429 = vadd.xlane.f32.xlu0 %v414
    %v430 = vpop.xlane.xlu0 %429
    %431 = vadd.xlane.f32.xlu0 %v416
    %v432 = vpop.xlane.xlu0 %431
    %433 = vadd.xlane.f32.xlu0 %v418
    %v434 = vpop.xlane.xlu0 %433
    %v435 = vrcp.pop %v420
    %v436 = vrcp.pop %v422
    %v437 = vrcp.pop %v424
    %v438 = vrcp.pop %v426
    %v439 = vrcp.pop %v428
    %v440 = vrcp.pop %v430
    %v441 = vrcp.pop %v432
    %v442 = vrcp.pop %v434
    %v443 = vmul.f32 %v404, %v435
    %v444 = vmul.f32 %v406, %v436
    %v445 = vmul.f32 %v408, %v437
    %v446 = vmul.f32 %v410, %v438
    %v447 = vmul.f32 %v412, %v439
    %v448 = vmul.f32 %v414, %v440
    %v449 = vmul.f32 %v416, %v441
    %v450 = vmul.f32 %v418, %v442
    %451 = vst [vmem:[#allocation8] sm:$0xff] %v443
    %452 = vst [vmem:[#allocation8 + $0x8] sm:$0xff] %v444
    %453 = vst [vmem:[#allocation8 + $0x10] sm:$0xff] %v445
    %454 = vst [vmem:[#allocation8 + $0x18] sm:$0xff] %v446
    %455 = vst [vmem:[#allocation8 + $0x20] sm:$0xff] %v447
    %456 = vst [vmem:[#allocation8 + $0x28] sm:$0xff] %v448
    %457 = vst [vmem:[#allocation8 + $0x30] sm:$0xff] %v449
    %458 = vst [vmem:[#allocation8 + $0x38] sm:$0xff] %v450
    // Predicated region
    $region34: #{tpu_custom_call.1} parent=1 // pred_check
      _
    $region35: #{tpu_custom_call.1} parent=1 // pred_check_branch
      %460 = sbr.rel (0) target = $region37
    $region36: #{tpu_custom_call.1} parent=1 // pred_region
      %s462 = ssub.s32 1024, 1024
      %463 = vsyncadd [#allocation4], %s462
      %s464 = sshll.u32 [#allocation8], 4
      %s465 = int_to_ptr.vmem [resolvable:$true] %s464
      %470 = dma.vmem_to_hbm [thread:$0]  %s465, 1024, %s5, [#allocation4], 128, 128, 8
    $region37: #{tpu_custom_call.1} parent=1 // pred_fallthru
      _
    // Predicated region
    $region38: #{tpu_custom_call.1} parent=1 // pred_check
      _
    $region39: #{tpu_custom_call.1} parent=1 // pred_check_branch
      %472 = sbr.rel (0) target = $region41
    $region40: #{tpu_custom_call.1} parent=1 // pred_region
      %473 = dma.done [#allocation4], 1024
    $region41: #{tpu_custom_call.1} parent=1 // pred_fallthru
      _
    %474 = vsyncpa [#allocation3], 1
    %475 = vsyncpa [#allocation6], 1
    %476 = vsyncpa [#allocation4], 1

</llo_original>
